<compile_context>
chip_gen: v5e
topology: v5e:2x2
jax: 0.10.0
libtpu: 0.0.40
codegen_flags: <defaults>
</compile_context>

<pallas_src>
import functools
import math

import jax
import jax.numpy as jnp
from jax.experimental import pallas as pl
from jax.experimental.pallas import tpu as pltpu

HIDDEN = 64
_LANE = 128                       # lane quantum: keeps output stores unmasked
_VMEM_BUDGET = 14 * 1024 * 1024   # conservative tile budget (fits all gens)
_VMEM_LIMIT = 32 * 1024 * 1024    # explicit scoped limit (v5e default is 16 MiB)


def _round_up(x, m):
    return ((x + m - 1) // m) * m


# ----------------------------- Pallas kernel ------------------------------ #
def _valuenet_kernel(x_ref, w1_ref, b1_ref, w2_ref, b2_ref, w3_ref, b3_ref,
                     out_ref, *, head_vpu):
    """Fused 3-layer MLP on one lane-major (in_dim, TB) batch tile.

    Weights/biases use constant index_maps so they stay VMEM-resident across
    the whole grid.  Matmuls are LHS = weight [out, in] (PyTorch layout),
    RHS = activation (feat, TB): the MXU N-dim is the batch tile (lane-dense).
    """
    cd = w1_ref.dtype                                    # MXU compute dtype

    x = x_ref[...].astype(cd)                            # VPU cast; obs streams f32

    h1 = jnp.dot(w1_ref[...], x, preferred_element_type=jnp.float32)
    h1 = jnp.maximum(h1 + b1_ref[...], 0.0)              # (H, TB) f32 bias/ReLU

    h2 = jnp.dot(w2_ref[...], h1.astype(cd), preferred_element_type=jnp.float32)
    h2 = jnp.maximum(h2 + b2_ref[...], 0.0)              # (H, TB)

    if head_vpu:
        # out_dim == 1 (PPO critic head): w3 passed as an f32 (H, 1) column.
        # VPU multiply + sublane reduce; avoids an MXU push with one useful row.
        out = jnp.sum(h2 * w3_ref[...], axis=0, keepdims=True)        # (1, TB)
    else:
        out = jnp.dot(w3_ref[...], h2.astype(cd),
                      preferred_element_type=jnp.float32)             # (out, TB)

    out_ref[...] = out + b3_ref[...]                     # lane-dense store


# ------------------------------- wrapper ----------------------------------- #
def valuenet_forward(obs, params, *, compute_dtype=jnp.bfloat16,
                     block_batch=2048):
    """Fused ValueNet forward via pallas_call.

    obs:    [B, in_dim] float32 (row-major, as produced by the rollout buffer).
    params: PyTorch-oriented weights: w1 [64, in_dim], w2 [64, 64],
            w3 [out_dim, 64]; biases b1/b2 [64], b3 [out_dim].
    compute_dtype: MXU dtype (default bf16; accumulation is always f32).
    """
    B, in_dim = obs.shape
    out_dim = params["w3"].shape[0]
    H = HIDDEN
    cd = jnp.dtype(compute_dtype)
    head_vpu = (out_dim == 1)

    # Weights: cast once (tiny, fetched once, VMEM-resident). Kept in PyTorch
    # [out, in] orientation -> directly the MXU LHS. Biases become columns so
    # they broadcast along the lane (batch) axis.
    w1 = params["w1"].astype(cd)
    w2 = params["w2"].astype(cd)
    b1 = params["b1"].reshape(H, 1).astype(jnp.float32)
    b2 = params["b2"].reshape(H, 1).astype(jnp.float32)
    b3 = params["b3"].reshape(out_dim, 1).astype(jnp.float32)
    if head_vpu:
        w3 = params["w3"].reshape(H, 1).astype(jnp.float32)   # (H, 1) f32 column
    else:
        w3 = params["w3"].astype(cd)                           # (out_dim, H)

    # Lane-major obs: the wrapper transpose is layout plumbing (ideally the
    # rollout buffer is stored feature-major and this becomes a no-op).
    # obs stays f32 here; the bf16 cast happens on the VPU inside the kernel.
    obs_t = obs.T                                              # (in_dim, B)

    # ---- batch-tile sizing -------------------------------------------------
    def footprint(t):
        stream = 2 * (in_dim + out_dim) * t * 4                 # dbl-buffered obs/out (f32)
        weights = 2 * (in_dim * H + H * H + out_dim * H) * cd.itemsize
        biases = 2 * 4 * (2 * H + out_dim + (H if head_vpu else 0))
        inter = 2 * H * t * 4                                   # h1 / h2 (f32)
        casts = (in_dim + 2 * H) * t * cd.itemsize              # in-kernel cd copies
        return stream + weights + biases + inter + casts

    if B <= _LANE:
        tb = B                                # single full-array tile
    else:
        tb = min(_round_up(block_batch, _LANE), _round_up(B, _LANE))
        # Keep >= 2 grid steps when possible so v7x's 2 TensorCores both work.
        tb = min(tb, max(_LANE, _round_up(pl.cdiv(B, 2), _LANE)))
        while tb > _LANE and footprint(tb) > _VMEM_BUDGET:
            tb = max(_LANE, _round_up(tb // 2, _LANE))
    grid = (pl.cdiv(B, tb),)                  # masked tail tile; no jnp.pad pass

    obs_spec = pl.BlockSpec((in_dim, tb), lambda i: (0, i))
    out_spec = pl.BlockSpec((out_dim, tb), lambda i: (0, i))
    const = lambda a: pl.BlockSpec(a.shape, lambda i: (0, 0))
    # TODO(synk): pipeline_mode=pl.Buffered(1) on the constant weight specs
    # would halve their VMEM buffers for very large in_dim.

    flops = 2 * B * (in_dim * H + H * H + H * out_dim)
    bytes_accessed = (B * in_dim * 4 + B * out_dim * 4 +
                      (in_dim * H + H * H + out_dim * H) * cd.itemsize)

    kernel = functools.partial(_valuenet_kernel, head_vpu=head_vpu)

    out_t = pl.pallas_call(
        kernel,
        out_shape=jax.ShapeDtypeStruct((out_dim, B), jnp.float32),
        grid=grid,
        in_specs=[obs_spec,
                  const(w1), const(b1),
                  const(w2), const(b2),
                  const(w3), const(b3)],
        out_specs=out_spec,
        compiler_params=pltpu.CompilerParams(
            dimension_semantics=("parallel",),
            vmem_limit_bytes=_VMEM_LIMIT),
        cost_estimate=pl.CostEstimate(flops=flops, transcendentals=0,
                                      bytes_accessed=bytes_accessed),
    )(obs_t, w1, b1, w2, b2, w3, b3)

    return out_t.T                            # (B, out_dim)


# --------------------------- parameter creation ---------------------------- #
def orthogonal(key, shape, std):
    """Deterministic orthogonal init (mimics torch.nn.init.orthogonal_)."""
    rows, cols = shape
    flat = jax.random.normal(key, (max(rows, cols), min(rows, cols)),
                             dtype=jnp.float32)
    q, r = jnp.linalg.qr(flat)
    d = jnp.diag(r)
    q = q * jnp.where(d >= 0.0, 1.0, -1.0)[None, :]   # avoid sign(0)=0 hazard
    if rows < cols:
        q = q.T
    return std * q[:rows, :cols]


def init_valuenet_params(key, in_dim, out_dim):
    k1, k2, k3 = jax.random.split(key, 3)
    s2 = math.sqrt(2.0)
    # PyTorch Linear weight is [out, in]; kept that way (it is the MXU LHS).
    return {
        "w1": orthogonal(k1, (HIDDEN, in_dim), std=s2),
        "b1": jnp.zeros((HIDDEN,), jnp.float32),
        "w2": orthogonal(k2, (HIDDEN, HIDDEN), std=s2),
        "b2": jnp.zeros((HIDDEN,), jnp.float32),
        "w3": orthogonal(k3, (out_dim, HIDDEN), std=1.0),
        "b3": jnp.zeros((out_dim,), jnp.float32),
    }


# ------------------------------ reference --------------------------------- #
def valuenet_ref(obs, p, compute_dtype=jnp.bfloat16):
    """Pure-JAX reference mirroring the kernel's dtype handling."""
    cd = jnp.dtype(compute_dtype)
    hp = jax.lax.Precision.HIGHEST
    x = obs.astype(cd)
    h1 = jnp.maximum(
        jnp.dot(x, p["w1"].astype(cd).T, preferred_element_type=jnp.float32,
                precision=hp) + p["b1"][None, :], 0.0)
    h2 = jnp.maximum(
        jnp.dot(h1.astype(cd), p["w2"].astype(cd).T,
                preferred_element_type=jnp.float32, precision=hp)
        + p["b2"][None, :], 0.0)
    if p["w3"].shape[0] == 1:
        out = jnp.dot(h2, p["w3"].astype(jnp.float32).T,
                      preferred_element_type=jnp.float32, precision=hp)
    else:
        out = jnp.dot(h2.astype(cd), p["w3"].astype(cd).T,
                      preferred_element_type=jnp.float32, precision=hp)
    return out + p["b3"][None, :]


# --------------------------------- main ------------------------------------ #
if __name__ == "__main__":
    in_dim, out_dim = 32, 1
    key = jax.random.PRNGKey(0)
    k_obs, k_obs2, k_params = jax.random.split(key, 3)
    params = init_valuenet_params(k_params, in_dim, out_dim)

    # Small single-tile batch (bf16 MXU path, the default).
    obs = jax.random.normal(k_obs, (8, in_dim), dtype=jnp.float32)
    out = jax.block_until_ready(valuenet_forward(obs, params))
    ref = valuenet_ref(obs, params)
    assert out.shape == (8, out_dim)
    assert jnp.allclose(out, ref, atol=2e-2, rtol=2e-2), \
        "bf16 mismatch vs reference"

    # f32 MXU path. Tolerance is set to be robust across the MXU's f32
    # emulation modes; any layout/bias/masking bug would give O(1) errors.
    out32 = jax.block_until_ready(
        valuenet_forward(obs, params, compute_dtype=jnp.float32))
    ref32 = valuenet_ref(obs, params, compute_dtype=jnp.float32)
    assert jnp.allclose(out32, ref32, atol=1e-2, rtol=1e-2), \
        "f32 mismatch vs reference"

    # Ragged multi-tile batch: exercises the cdiv grid + masked tail tile.
    obs2 = jax.random.normal(k_obs2, (300, in_dim), dtype=jnp.float32)
    out2 = jax.block_until_ready(
        valuenet_forward(obs2, params, block_batch=128))
    ref2 = valuenet_ref(obs2, params)
    assert out2.shape == (300, out_dim)
    assert jnp.allclose(out2, ref2, atol=2e-2, rtol=2e-2), \
        "ragged-batch mismatch vs reference"

    print("KERNEL_OK")
</pallas_src>

<mosaic_0001>
module attributes {stable_mosaic.version = 11 : i64} {
  func.func @_valuenet_kernel(%arg0: i32, %arg1: memref<32x8xf32, #tpu.memory_space<vmem>>, %arg2: memref<64x32xbf16, #tpu.memory_space<vmem>>, %arg3: memref<64x1xf32, #tpu.memory_space<vmem>>, %arg4: memref<64x64xbf16, #tpu.memory_space<vmem>>, %arg5: memref<64x1xf32, #tpu.memory_space<vmem>>, %arg6: memref<64x1xf32, #tpu.memory_space<vmem>>, %arg7: memref<1x1xf32, #tpu.memory_space<vmem>>, %arg8: memref<1x8xf32, #tpu.memory_space<vmem>>) attributes {dimension_semantics = [#tpu.dimension_semantics<parallel>], iteration_bounds = array<i64: 1>, scalar_prefetch = 0 : i64, scratch_operands = 0 : i64, tpu.core_type = #tpu.core_type<tc>, window_params = [{transform_indices = @transform_0, window_bounds = array<i64: 32, 8>}, {pipeline_mode = #tpu.pipeline_mode<synchronous>, transform_indices = @transform_1, window_bounds = array<i64: 64, 32>}, {pipeline_mode = #tpu.pipeline_mode<synchronous>, transform_indices = @transform_2, window_bounds = array<i64: 64, 1>}, {pipeline_mode = #tpu.pipeline_mode<synchronous>, transform_indices = @transform_3, window_bounds = array<i64: 64, 64>}, {pipeline_mode = #tpu.pipeline_mode<synchronous>, transform_indices = @transform_4, window_bounds = array<i64: 64, 1>}, {pipeline_mode = #tpu.pipeline_mode<synchronous>, transform_indices = @transform_5, window_bounds = array<i64: 64, 1>}, {pipeline_mode = #tpu.pipeline_mode<synchronous>, transform_indices = @transform_6, window_bounds = array<i64: 1, 1>}, {transform_indices = @transform_7, window_bounds = array<i64: 1, 8>}]} {
    %c0 = arith.constant 0 : index
    %c0_0 = arith.constant 0 : index
    %0 = vector.load %arg1[%c0, %c0_0] : memref<32x8xf32, #tpu.memory_space<vmem>>, vector<32x8xf32>
    %1 = arith.truncf %0 : vector<32x8xf32> to vector<32x8xbf16>
    %c0_1 = arith.constant 0 : index
    %c0_2 = arith.constant 0 : index
    %2 = vector.load %arg2[%c0_1, %c0_2] : memref<64x32xbf16, #tpu.memory_space<vmem>>, vector<64x32xbf16>
    %cst = arith.constant dense<0.000000e+00> : vector<64x8xf32>
    %3 = tpu.matmul %2, %1, %cst {dimension_numbers = #tpu.dot_dimension_numbers<[1], [0], [0], [1], [0, 0, 1, 1], [], []>} : vector<64x32xbf16>, vector<32x8xbf16>, vector<64x8xf32> -> vector<64x8xf32>
    %c0_3 = arith.constant 0 : index
    %c0_4 = arith.constant 0 : index
    %4 = vector.load %arg3[%c0_3, %c0_4] : memref<64x1xf32, #tpu.memory_space<vmem>>, vector<64x1xf32>
    %5 = vector.broadcast %4 : vector<64x1xf32> to vector<64x8xf32>
    %6 = arith.addf %3, %5 : vector<64x8xf32>
    %cst_5 = arith.constant 0.000000e+00 : f32
    %7 = vector.broadcast %cst_5 : f32 to vector<64x8xf32>
    %8 = arith.maximumf %6, %7 : vector<64x8xf32>
    %c0_6 = arith.constant 0 : index
    %c0_7 = arith.constant 0 : index
    %9 = vector.load %arg4[%c0_6, %c0_7] : memref<64x64xbf16, #tpu.memory_space<vmem>>, vector<64x64xbf16>
    %10 = arith.truncf %8 : vector<64x8xf32> to vector<64x8xbf16>
    %cst_8 = arith.constant dense<0.000000e+00> : vector<64x8xf32>
    %11 = tpu.matmul %9, %10, %cst_8 {dimension_numbers = #tpu.dot_dimension_numbers<[1], [0], [0], [1], [0, 0, 1, 1], [], []>} : vector<64x64xbf16>, vector<64x8xbf16>, vector<64x8xf32> -> vector<64x8xf32>
    %c0_9 = arith.constant 0 : index
    %c0_10 = arith.constant 0 : index
    %12 = vector.load %arg5[%c0_9, %c0_10] : memref<64x1xf32, #tpu.memory_space<vmem>>, vector<64x1xf32>
    %13 = vector.broadcast %12 : vector<64x1xf32> to vector<64x8xf32>
    %14 = arith.addf %11, %13 : vector<64x8xf32>
    %cst_11 = arith.constant 0.000000e+00 : f32
    %15 = vector.broadcast %cst_11 : f32 to vector<64x8xf32>
    %16 = arith.maximumf %14, %15 : vector<64x8xf32>
    %c0_12 = arith.constant 0 : index
    %c0_13 = arith.constant 0 : index
    %17 = vector.load %arg6[%c0_12, %c0_13] : memref<64x1xf32, #tpu.memory_space<vmem>>, vector<64x1xf32>
    %18 = vector.broadcast %17 : vector<64x1xf32> to vector<64x8xf32>
    %19 = arith.mulf %16, %18 : vector<64x8xf32>
    %cst_14 = arith.constant dense<0.000000e+00> : vector<8xf32>
    %20 = vector.multi_reduction <add>, %19, %cst_14 [0] : vector<64x8xf32> to vector<8xf32>
    %21 = vector.shape_cast %20 : vector<8xf32> to vector<1x8xf32>
    %c0_15 = arith.constant 0 : index
    %c0_16 = arith.constant 0 : index
    %22 = vector.load %arg7[%c0_15, %c0_16] : memref<1x1xf32, #tpu.memory_space<vmem>>, vector<1x1xf32>
    %23 = vector.broadcast %22 : vector<1x1xf32> to vector<1x8xf32>
    %24 = arith.addf %21, %23 : vector<1x8xf32>
    %c0_17 = arith.constant 0 : index
    %c0_18 = arith.constant 0 : index
    %25 = vector.load %arg8[%c0_17, %c0_18] : memref<1x8xf32, #tpu.memory_space<vmem>>, vector<1x8xf32>
    tpu.vector_store %arg8[%c0_17, %c0_18], %24 {strides = array<i32>} : memref<1x8xf32, #tpu.memory_space<vmem>>, vector<1x8xf32>,
    return
  }
  func.func @transform_0(%arg0: i32) -> (i32, i32) {
    %c0_i32 = arith.constant 0 : i32
    %c0_i32_0 = arith.constant 0 : i32
    return %c0_i32, %arg0 : i32, i32
  }
  func.func @transform_1(%arg0: i32) -> (i32, i32) {
    %c0_i32 = arith.constant 0 : i32
    %c0_i32_0 = arith.constant 0 : i32
    %c0_i32_1 = arith.constant 0 : i32
    return %c0_i32, %c0_i32_0 : i32, i32
  }
  func.func @transform_2(%arg0: i32) -> (i32, i32) {
    %c0_i32 = arith.constant 0 : i32
    %c0_i32_0 = arith.constant 0 : i32
    %c0_i32_1 = arith.constant 0 : i32
    return %c0_i32, %c0_i32_0 : i32, i32
  }
  func.func @transform_3(%arg0: i32) -> (i32, i32) {
    %c0_i32 = arith.constant 0 : i32
    %c0_i32_0 = arith.constant 0 : i32
    %c0_i32_1 = arith.constant 0 : i32
    return %c0_i32, %c0_i32_0 : i32, i32
  }
  func.func @transform_4(%arg0: i32) -> (i32, i32) {
    %c0_i32 = arith.constant 0 : i32
    %c0_i32_0 = arith.constant 0 : i32
    %c0_i32_1 = arith.constant 0 : i32
    return %c0_i32, %c0_i32_0 : i32, i32
  }
  func.func @transform_5(%arg0: i32) -> (i32, i32) {
    %c0_i32 = arith.constant 0 : i32
    %c0_i32_0 = arith.constant 0 : i32
    %c0_i32_1 = arith.constant 0 : i32
    return %c0_i32, %c0_i32_0 : i32, i32
  }
  func.func @transform_6(%arg0: i32) -> (i32, i32) {
    %c0_i32 = arith.constant 0 : i32
    %c0_i32_0 = arith.constant 0 : i32
    %c0_i32_1 = arith.constant 0 : i32
    return %c0_i32, %c0_i32_0 : i32, i32
  }
  func.func @transform_7(%arg0: i32) -> (i32, i32) {
    %c0_i32 = arith.constant 0 : i32
    %c0_i32_0 = arith.constant 0 : i32
    return %c0_i32, %arg0 : i32, i32
  }
}

</mosaic_0001>

<llo_original>
// kernel: tpu_custom_call.1
$region0: #{tpu_custom_call.1}
  #allocation0 [shape = 'u32[]', space=smem, size = 0x4, offset = 0x4, fixed_abs, tag = 'smem constant byte address 0x4 - core index']
  #allocation1 [shape = 'u32[72,128]{1,0:T(1,128)}', space=vmem, size = 0x9000, scoped, tag = 'internal scratch']
  #allocation2 [shape = 'f32[1,1]{1,0:T(1,128)S(1)}', space=vmem, size = 0x200, scoped, tag = 'scoped memory for tpu_custom_call.1']
  %s0 = inlined_call_operand.vmem [shape: f32[32,8], index: 0, kind: input, shape index: {}]
  %s1 = inlined_call_operand.vmem [shape: bf16[64,32], index: 1, kind: input, shape index: {}]
  %s2 = inlined_call_operand.vmem [shape: f32[64,1], index: 2, kind: input, shape index: {}]
  %s3 = inlined_call_operand.vmem [shape: bf16[64,64], index: 3, kind: input, shape index: {}]
  %s4 = inlined_call_operand.vmem [shape: f32[64,1], index: 4, kind: input, shape index: {}]
  %s5 = inlined_call_operand.vmem [shape: f32[64,1], index: 5, kind: input, shape index: {}]
  %s6 = inlined_call_operand.<no memory space> [shape: f32[1,1], index: 6, kind: input, shape index: {}]
  %s7 = inlined_call_operand.hbm [shape: f32[1,8], index: 7, kind: output, shape index: {}]
  %s8 = sld [smem:[#allocation0]]
  $region38: #{tpu_custom_call.1} parent=0
    _
  %s10 = ssub.s32 1, %s8
  %s11 = scalar_select 0, %s10, %s8
  %v12 = vstv %s6
  %13 = vst [vmem:[#allocation2] sm:$0x1] %v12
  $region1: #{tpu_custom_call.1} parent=0
    #allocation3 [shape = 'u8[512]{0}', space=vmem, size = 0x400, scoped, tag = 'output window, operand 0, single buffered']
    #allocation4 [shape = 's32[1]{0}', space=sflag, size = 0x4, scoped, tag = 'scoped memory for tpu_custom_call.1']
    %14 = vsyncpa [#allocation4], 0
    // Predicated region
    $region2: #{tpu_custom_call.1} parent=1 // pred_check
      _
    $region3: #{tpu_custom_call.1} parent=1 // pred_check_branch
      %16 = sbr.rel (0) target = $region5
    $region4: #{tpu_custom_call.1} parent=1 // pred_region
      _
    $region5: #{tpu_custom_call.1} parent=1 // pred_fallthru
      _
    // Predicated region
    $region6: #{tpu_custom_call.1} parent=1 // pred_check
      _
    $region7: #{tpu_custom_call.1} parent=1 // pred_check_branch
      %18 = sbr.rel (0) target = $region9
    $region8: #{tpu_custom_call.1} parent=1 // pred_region
      _
    $region9: #{tpu_custom_call.1} parent=1 // pred_fallthru
      _
    // Predicated region
    $region10: #{tpu_custom_call.1} parent=1 // pred_check
      _
    $region11: #{tpu_custom_call.1} parent=1 // pred_check_branch
      %20 = sbr.rel (0) target = $region13
    $region12: #{tpu_custom_call.1} parent=1 // pred_region
      _
    $region13: #{tpu_custom_call.1} parent=1 // pred_fallthru
      _
    // Predicated region
    $region14: #{tpu_custom_call.1} parent=1 // pred_check
      _
    $region15: #{tpu_custom_call.1} parent=1 // pred_check_branch
      %22 = sbr.rel (0) target = $region17
    $region16: #{tpu_custom_call.1} parent=1 // pred_region
      _
    $region17: #{tpu_custom_call.1} parent=1 // pred_fallthru
      _
    // Predicated region
    $region18: #{tpu_custom_call.1} parent=1 // pred_check
      _
    $region19: #{tpu_custom_call.1} parent=1 // pred_check_branch
      %24 = sbr.rel (0) target = $region21
    $region20: #{tpu_custom_call.1} parent=1 // pred_region
      _
    $region21: #{tpu_custom_call.1} parent=1 // pred_fallthru
      _
    // Predicated region
    $region22: #{tpu_custom_call.1} parent=1 // pred_check
      _
    $region23: #{tpu_custom_call.1} parent=1 // pred_check_branch
      %26 = sbr.rel (0) target = $region25
    $region24: #{tpu_custom_call.1} parent=1 // pred_region
      _
    $region25: #{tpu_custom_call.1} parent=1 // pred_fallthru
      _
    // Predicated region
    $region26: #{tpu_custom_call.1} parent=1 // pred_check
      _
    $region27: #{tpu_custom_call.1} parent=1 // pred_check_branch
      %28 = sbr.rel (0) target = $region29
    $region28: #{tpu_custom_call.1} parent=1 // pred_region
      _
    $region29: #{tpu_custom_call.1} parent=1 // pred_fallthru
      _
    %v30 = vld [vmem:[%s0] sm:$0xff]
    %v31 = vld [vmem:[%s0 + $0x8] sm:$0xff]
    %v32 = vld [vmem:[%s0 + $0x10] sm:$0xff]
    %v33 = vld [vmem:[%s0 + $0x18] sm:$0xff]
    %v34 = vpack.c.bf16 %v31, %v30
    %v35 = vpack.c.bf16 %v33, %v32
    %v36 = vld [vmem:[%s1] sm:$0xf]
    %v37 = vld [vmem:[%s1 + $0x4] sm:$0xf]
    %v38 = vld [vmem:[%s1 + $0x8] sm:$0xf]
    %v39 = vld [vmem:[%s1 + $0xc] sm:$0xf]
    %v40 = vld [vmem:[%s1 + $0x10] sm:$0xf]
    %v41 = vld [vmem:[%s1 + $0x14] sm:$0xf]
    %v42 = vld [vmem:[%s1 + $0x18] sm:$0xf]
    %v43 = vld [vmem:[%s1 + $0x1c] sm:$0xf]
    %v44 = vld [vmem:[%s2] sm:$0xff]
    %v45 = vld [vmem:[%s2 + $0x8] sm:$0xff]
    %v46 = vld [vmem:[%s2 + $0x10] sm:$0xff]
    %v47 = vld [vmem:[%s2 + $0x18] sm:$0xff]
    %v48 = vld [vmem:[%s2 + $0x20] sm:$0xff]
    %v49 = vld [vmem:[%s2 + $0x28] sm:$0xff]
    %v50 = vld [vmem:[%s2 + $0x30] sm:$0xff]
    %v51 = vld [vmem:[%s2 + $0x38] sm:$0xff]
    %53 = vset.pattern.permute.xlu0 0
    %54 = vperm.xlu0 %53, %v44
    %v55 = vpop.permute.xlu0 %54
    %58 = vset.pattern.permute.xlu0 0
    %59 = vperm.xlu0 %58, %v45
    %v60 = vpop.permute.xlu0 %59
    %63 = vset.pattern.permute.xlu0 0
    %64 = vperm.xlu0 %63, %v46
    %v65 = vpop.permute.xlu0 %64
    %68 = vset.pattern.permute.xlu0 0
    %69 = vperm.xlu0 %68, %v47
    %v70 = vpop.permute.xlu0 %69
    %73 = vset.pattern.permute.xlu0 0
    %74 = vperm.xlu0 %73, %v48
    %v75 = vpop.permute.xlu0 %74
    %78 = vset.pattern.permute.xlu0 0
    %79 = vperm.xlu0 %78, %v49
    %v80 = vpop.permute.xlu0 %79
    %83 = vset.pattern.permute.xlu0 0
    %84 = vperm.xlu0 %83, %v50
    %v85 = vpop.permute.xlu0 %84
    %88 = vset.pattern.permute.xlu0 0
    %89 = vperm.xlu0 %88, %v51
    %v90 = vpop.permute.xlu0 %89
    %v100 = vunpack.c.l.b16 %v36
    %v101 = vunpack.c.l.b16 %v37
    %v102 = vunpack.c.l.b16 %v38
    %v103 = vunpack.c.l.b16 %v39
    %v104 = vunpack.c.l.b16 %v40
    %v105 = vunpack.c.l.b16 %v41
    %v106 = vunpack.c.l.b16 %v42
    %v107 = vunpack.c.l.b16 %v43
    %v108 = vpack.c.b16 %v101, %v100
    %v109 = vpack.c.b16 %v103, %v102
    %v110 = vpack.c.b16 %v105, %v104
    %v111 = vpack.c.b16 %v107, %v106
    %vm112 = vcmask 261120
    %v114 = vsel %vm112, %v108, 0
    %v117 = vsel %vm112, %v109, 0
    %v120 = vsel %vm112, %v110, 0
    %v123 = vsel %vm112, %v111, 0
    %125 = vmatpush.bf16.msra.mxu0 0
    %126 = vmatpush.bf16.msra.mxu0 0
    %127 = vmatpush.bf16.msra.mxu0 0
    %128 = vmatpush.bf16.msra.mxu0 0
    %129 = vmatpush.bf16.msra.mxu0 0
    %130 = vmatpush.bf16.msra.mxu0 0
    %131 = vmatpush.bf16.msra.mxu0 %v35
    %132 = vmatpush.bf16.msra.mxu0 %v34
    %133 = vmatmul.bf16.gmra.mxu0 %v114
    %v134 = vpop.f32.mrf.mxu0
    %v135 = vadd.f32 %v55, %v134
    %v136 = vpop.f32.mrf.mxu0
    %v137 = vadd.f32 %v60, %v136
    %138 = vmatmul.bf16.gmra.mxu0 %v117
    %v139 = vpop.f32.mrf.mxu0
    %v140 = vadd.f32 %v65, %v139
    %v141 = vpop.f32.mrf.mxu0
    %v142 = vadd.f32 %v70, %v141
    %143 = vmatmul.bf16.gmra.mxu0 %v120
    %v144 = vpop.f32.mrf.mxu0
    %v145 = vadd.f32 %v75, %v144
    %v146 = vpop.f32.mrf.mxu0
    %v147 = vadd.f32 %v80, %v146
    %148 = vmatmul.bf16.gmra.mxu0 %v123
    %v149 = vpop.f32.mrf.mxu0
    %v150 = vadd.f32 %v85, %v149
    %v151 = vpop.f32.mrf.mxu0
    %v152 = vadd.f32 %v90, %v151
    %153 = vdwg.mxu0
    %v154 = vmax.f32 %v135, 0.0
    %v155 = vmax.f32 %v137, 0.0
    %v156 = vmax.f32 %v140, 0.0
    %v157 = vmax.f32 %v142, 0.0
    %v158 = vmax.f32 %v145, 0.0
    %v159 = vmax.f32 %v147, 0.0
    %v160 = vmax.f32 %v150, 0.0
    %v161 = vmax.f32 %v152, 0.0
    %v162 = vld [vmem:[%s3] sm:$0xf]
    %v163 = vld [vmem:[%s3 + $0x4] sm:$0xf]
    %v164 = vld [vmem:[%s3 + $0x8] sm:$0xf]
    %v165 = vld [vmem:[%s3 + $0xc] sm:$0xf]
    %v166 = vld [vmem:[%s3 + $0x10] sm:$0xf]
    %v167 = vld [vmem:[%s3 + $0x14] sm:$0xf]
    %v168 = vld [vmem:[%s3 + $0x18] sm:$0xf]
    %v169 = vld [vmem:[%s3 + $0x1c] sm:$0xf]
    %v170 = vpack.c.bf16 %v155, %v154
    %v171 = vpack.c.bf16 %v157, %v156
    %v172 = vpack.c.bf16 %v159, %v158
    %v173 = vpack.c.bf16 %v161, %v160
    %v174 = vld [vmem:[%s4] sm:$0xff]
    %v175 = vld [vmem:[%s4 + $0x8] sm:$0xff]
    %v176 = vld [vmem:[%s4 + $0x10] sm:$0xff]
    %v177 = vld [vmem:[%s4 + $0x18] sm:$0xff]
    %v178 = vld [vmem:[%s4 + $0x20] sm:$0xff]
    %v179 = vld [vmem:[%s4 + $0x28] sm:$0xff]
    %v180 = vld [vmem:[%s4 + $0x30] sm:$0xff]
    %v181 = vld [vmem:[%s4 + $0x38] sm:$0xff]
    %183 = vset.pattern.permute.xlu0 0
    %184 = vperm.xlu0 %183, %v174
    %v185 = vpop.permute.xlu0 %184
    %188 = vset.pattern.permute.xlu0 0
    %189 = vperm.xlu0 %188, %v175
    %v190 = vpop.permute.xlu0 %189
    %193 = vset.pattern.permute.xlu0 0
    %194 = vperm.xlu0 %193, %v176
    %v195 = vpop.permute.xlu0 %194
    %198 = vset.pattern.permute.xlu0 0
    %199 = vperm.xlu0 %198, %v177
    %v200 = vpop.permute.xlu0 %199
    %203 = vset.pattern.permute.xlu0 0
    %204 = vperm.xlu0 %203, %v178
    %v205 = vpop.permute.xlu0 %204
    %208 = vset.pattern.permute.xlu0 0
    %209 = vperm.xlu0 %208, %v179
    %v210 = vpop.permute.xlu0 %209
    %213 = vset.pattern.permute.xlu0 0
    %214 = vperm.xlu0 %213, %v180
    %v215 = vpop.permute.xlu0 %214
    %218 = vset.pattern.permute.xlu0 0
    %219 = vperm.xlu0 %218, %v181
    %v220 = vpop.permute.xlu0 %219
    %v230 = vunpack.c.l.b16 %v162
    %v231 = vunpack.c.l.b16 %v163
    %v232 = vunpack.c.l.b16 %v164
    %v233 = vunpack.c.l.b16 %v165
    %v234 = vunpack.c.l.b16 %v166
    %v235 = vunpack.c.l.b16 %v167
    %v236 = vunpack.c.l.b16 %v168
    %v237 = vunpack.c.l.b16 %v169
    %v238 = vpack.c.b16 %v231, %v230
    %v239 = vpack.c.b16 %v233, %v232
    %v240 = vpack.c.b16 %v235, %v234
    %v241 = vpack.c.b16 %v237, %v236
    %vm242 = vcmask 523264
    %v244 = vsel %vm242, %v238, 0
    %v247 = vsel %vm242, %v239, 0
    %v250 = vsel %vm242, %v240, 0
    %v253 = vsel %vm242, %v241, 0
    %255 = vmatpush.bf16.msra.mxu0 0
    %256 = vmatpush.bf16.msra.mxu0 0
    %257 = vmatpush.bf16.msra.mxu0 0
    %258 = vmatpush.bf16.msra.mxu0 0
    %259 = vmatpush.bf16.msra.mxu0 %v173
    %260 = vmatpush.bf16.msra.mxu0 %v172
    %261 = vmatpush.bf16.msra.mxu0 %v171
    %262 = vmatpush.bf16.msra.mxu0 %v170
    %263 = vmatmul.bf16.gmra.mxu0 %v244
    %v264 = vpop.f32.mrf.mxu0
    %v265 = vadd.f32 %v185, %v264
    %v266 = vpop.f32.mrf.mxu0
    %v267 = vadd.f32 %v190, %v266
    %268 = vmatmul.bf16.gmra.mxu0 %v247
    %v269 = vpop.f32.mrf.mxu0
    %v270 = vadd.f32 %v195, %v269
    %v271 = vpop.f32.mrf.mxu0
    %v272 = vadd.f32 %v200, %v271
    %273 = vmatmul.bf16.gmra.mxu0 %v250
    %v274 = vpop.f32.mrf.mxu0
    %v275 = vadd.f32 %v205, %v274
    %v276 = vpop.f32.mrf.mxu0
    %v277 = vadd.f32 %v210, %v276
    %278 = vmatmul.bf16.gmra.mxu0 %v253
    %v279 = vpop.f32.mrf.mxu0
    %v280 = vadd.f32 %v215, %v279
    %v281 = vpop.f32.mrf.mxu0
    %v282 = vadd.f32 %v220, %v281
    %283 = vdwg.mxu0
    %v284 = vmax.f32 %v265, 0.0
    %v285 = vmax.f32 %v267, 0.0
    %v286 = vmax.f32 %v270, 0.0
    %v287 = vmax.f32 %v272, 0.0
    %v288 = vmax.f32 %v275, 0.0
    %v289 = vmax.f32 %v277, 0.0
    %v290 = vmax.f32 %v280, 0.0
    %v291 = vmax.f32 %v282, 0.0
    %v292 = vld [vmem:[%s5] sm:$0xff]
    %v293 = vld [vmem:[%s5 + $0x8] sm:$0xff]
    %v294 = vld [vmem:[%s5 + $0x10] sm:$0xff]
    %v295 = vld [vmem:[%s5 + $0x18] sm:$0xff]
    %v296 = vld [vmem:[%s5 + $0x20] sm:$0xff]
    %v297 = vld [vmem:[%s5 + $0x28] sm:$0xff]
    %v298 = vld [vmem:[%s5 + $0x30] sm:$0xff]
    %v299 = vld [vmem:[%s5 + $0x38] sm:$0xff]
    %301 = vset.pattern.permute.xlu0 0
    %302 = vperm.xlu0 %301, %v292
    %v303 = vpop.permute.xlu0 %302
    %306 = vset.pattern.permute.xlu0 0
    %307 = vperm.xlu0 %306, %v293
    %v308 = vpop.permute.xlu0 %307
    %311 = vset.pattern.permute.xlu0 0
    %312 = vperm.xlu0 %311, %v294
    %v313 = vpop.permute.xlu0 %312
    %316 = vset.pattern.permute.xlu0 0
    %317 = vperm.xlu0 %316, %v295
    %v318 = vpop.permute.xlu0 %317
    %321 = vset.pattern.permute.xlu0 0
    %322 = vperm.xlu0 %321, %v296
    %v323 = vpop.permute.xlu0 %322
    %326 = vset.pattern.permute.xlu0 0
    %327 = vperm.xlu0 %326, %v297
    %v328 = vpop.permute.xlu0 %327
    %331 = vset.pattern.permute.xlu0 0
    %332 = vperm.xlu0 %331, %v298
    %v333 = vpop.permute.xlu0 %332
    %336 = vset.pattern.permute.xlu0 0
    %337 = vperm.xlu0 %336, %v299
    %v338 = vpop.permute.xlu0 %337
    %v340 = vmul.f32 %v284, %v303
    %v341 = vmul.f32 %v285, %v308
    %v342 = vmul.f32 %v286, %v313
    %v343 = vmul.f32 %v287, %v318
    %v344 = vmul.f32 %v288, %v323
    %v345 = vmul.f32 %v289, %v328
    %v346 = vmul.f32 %v290, %v333
    %v347 = vmul.f32 %v291, %v338
    %vm348 = vcmask 64512
    %v349 = vsel %vm348, %v340, 0.0
    %v350 = vsel %vm348, %v341, 0.0
    %v351 = vadd.f32 %v349, %v350
    %v352 = vsel %vm348, %v342, 0.0
    %v353 = vadd.f32 %v351, %v352
    %v354 = vsel %vm348, %v343, 0.0
    %v355 = vadd.f32 %v353, %v354
    %v356 = vsel %vm348, %v344, 0.0
    %v357 = vadd.f32 %v355, %v356
    %v358 = vsel %vm348, %v345, 0.0
    %v359 = vadd.f32 %v357, %v358
    %v360 = vsel %vm348, %v346, 0.0
    %v361 = vadd.f32 %v359, %v360
    %v362 = vsel %vm348, %v347, 0.0
    %v363 = vadd.f32 %v361, %v362
    %v364 = vrot.slane %v363, 4
    %v365 = vadd.f32 %v363, %v364
    %v366 = vrot.slane %v365, 2
    %v367 = vadd.f32 %v365, %v366
    %v368 = vrot.slane %v367, 1
    %v369 = vadd.f32 %v367, %v368
    %v370 = vld [vmem:[#allocation2] sm:$0x1]
    %372 = vset.pattern.permute.xlu0 0
    %373 = vperm.xlu0 %372, %v370
    %v374 = vpop.permute.xlu0 %373
    %v376 = vperm.slane %v374, 0
    %v377 = vadd.f32 %v369, %v376
    %vm378 = vcmask 57344
    %379 = vst.msk [vmem:[#allocation3] sm:$0x1] %vm378, %v377
    // Predicated region
    $region30: #{tpu_custom_call.1} parent=1 // pred_check
      _
    $region31: #{tpu_custom_call.1} parent=1 // pred_check_branch
      %381 = sbr.rel (0) target = $region33
    $region32: #{tpu_custom_call.1} parent=1 // pred_region
      %383 = vsyncadd [#allocation4], 0
      %s385 = sshll.u32 [#allocation3], 4
      %s386 = int_to_ptr.vmem [resolvable:$true] %s385
      %s387 = sshll.u32 %s7, 4
      %s388 = int_to_ptr.hbm [resolvable:$true] %s387
      %390 = dma.vmem_to_hbm [thread:$0]  %s386, 16, %s388, [#allocation4]
    $region33: #{tpu_custom_call.1} parent=1 // pred_fallthru
      _
    // Predicated region
    $region34: #{tpu_custom_call.1} parent=1 // pred_check
      _
    $region35: #{tpu_custom_call.1} parent=1 // pred_check_branch
      %392 = sbr.rel (0) target = $region37
    $region36: #{tpu_custom_call.1} parent=1 // pred_region
      %394 = dma.done [#allocation4], 16
    $region37: #{tpu_custom_call.1} parent=1 // pred_fallthru
      _
    %395 = vsyncpa [#allocation4], 1

</llo_original>
